<compile_context>
chip_gen: v7x
topology: tpu7x:2x2x1
jax: 0.10.0
libtpu: 0.0.40
codegen_flags: <defaults>
</compile_context>

<pallas_src>
import jax
import jax.numpy as jnp
from jax.experimental import pallas as pl
from jax.experimental.pallas import tpu as pltpu

_LANE_CANDIDATES = (4096, 2048, 1024, 512, 256, 128)
_TARGET_BLOCK_BYTES = 2 * 1024 * 1024  # ~2 MiB per block


def _round_up(x: int, m: int) -> int:
    return ((x + m - 1) // m) * m


def _adaptive_tanh_kernel(alpha_ref, x_ref, o_ref):
    # alpha_ref: SMEM scalar (shape (1,), f32); x_ref/o_ref: VMEM tiles.
    alpha = alpha_ref[0]
    o_ref[...] = jnp.tanh(alpha * x_ref[...]).astype(o_ref.dtype)


def adaptive_tanh(x: jax.Array, alpha: jax.Array) -> jax.Array:
    """Elementwise tanh(alpha * x) for any-shaped x (matches PyTorch forward)."""
    orig_shape = x.shape
    orig_dtype = x.dtype
    itemsize = jnp.dtype(orig_dtype).itemsize

    flat = x.reshape(-1)
    n = flat.shape[0]

    # Widest lane-dense last dim that divides n (avoids pad copies entirely).
    lane_width = None
    for cand in _LANE_CANDIDATES:
        if n % cand == 0:
            lane_width = cand
            break
    n_pad = 0
    if lane_width is None:
        # Rare fallback: small pad to a multiple of 512 (keeps stores lane-dense).
        lane_width = 512
        n_pad = (-n) % lane_width
        flat = jnp.concatenate([flat, jnp.zeros((n_pad,), dtype=orig_dtype)])

    rows = (n + n_pad) // lane_width
    x2d = flat.reshape(rows, lane_width)

    # Block sizing: ~2 MiB per block, sublane-aligned rows, and >= 2 grid steps
    # when there is enough work (feeds both v7x TensorCores).
    max_rows = max(8, (_TARGET_BLOCK_BYTES // (lane_width * itemsize)) // 8 * 8)
    if rows <= 8:
        block_rows = rows  # full-extent second-to-last dim is always legal
    else:
        block_rows = min(max_rows, _round_up(rows, 8))
        if rows >= 16 and block_rows >= rows:
            # Would collapse to a single grid step -> split into (at least) 2.
            block_rows = _round_up(pl.cdiv(rows, 2), 8)

    grid = (pl.cdiv(rows, block_rows),)

    n_total = rows * lane_width
    cost = pl.CostEstimate(
        flops=n_total,
        transcendentals=n_total,
        bytes_accessed=2 * n_total * itemsize,
    )

    # Keep alpha in f32 in SMEM; the multiply promotes as in PyTorch.
    alpha_smem = jnp.asarray(alpha, dtype=jnp.float32).reshape(1)

    out2d = pl.pallas_call(
        _adaptive_tanh_kernel,
        out_shape=jax.ShapeDtypeStruct((rows, lane_width), orig_dtype),
        grid_spec=pltpu.PrefetchScalarGridSpec(
            num_scalar_prefetch=0,
            grid=grid,
            in_specs=[
                pl.BlockSpec(memory_space=pltpu.SMEM),                    # alpha
                pl.BlockSpec((block_rows, lane_width), lambda i: (i, 0)),  # x tile
            ],
            out_specs=pl.BlockSpec((block_rows, lane_width), lambda i: (i, 0)),
        ),
        compiler_params=pltpu.CompilerParams(
            dimension_semantics=("parallel",),
        ),
        cost_estimate=cost,
    )(alpha_smem, x2d)

    out_flat = out2d.reshape(-1)
    if n_pad:
        out_flat = out_flat[:n]
    return out_flat.reshape(orig_shape)


if __name__ == "__main__":
    key = jax.random.PRNGKey(0)
    # Input shape consistent with "(N, *)": e.g. (2, 4, 16, 16)
    x = jax.random.normal(key, (2, 4, 16, 16), dtype=jnp.float32)

    # Deterministic parameter init, matching the module default alpha = 1.0
    alpha = jnp.array(1.0, dtype=jnp.float32)

    y = adaptive_tanh(x, alpha)
    y = jax.block_until_ready(y)

    # Reference check in plain JAX
    y_ref = jnp.tanh(alpha * x)
    assert y.shape == x.shape and y.dtype == x.dtype
    assert jnp.allclose(y, y_ref, atol=1e-6, rtol=1e-6)

    print("KERNEL_OK")
</pallas_src>

<mosaic_0001>
module attributes {stable_mosaic.version = 11 : i64} {
  func.func @_adaptive_tanh_kernel(%arg0: i32, %arg1: memref<1xf32, #tpu.memory_space<smem>>, %arg2: memref<1x2048xf32, #tpu.memory_space<vmem>>, %arg3: memref<1x2048xf32, #tpu.memory_space<vmem>>) attributes {dimension_semantics = [#tpu.dimension_semantics<parallel>], iteration_bounds = array<i64: 1>, scalar_prefetch = 0 : i64, scratch_operands = 0 : i64, tpu.core_type = #tpu.core_type<tc>, window_params = [{transform_indices = @transform_0, window_bounds = array<i64: 1>}, {transform_indices = @transform_1, window_bounds = array<i64: 1, 2048>}, {transform_indices = @transform_2, window_bounds = array<i64: 1, 2048>}]} {
    %c0 = arith.constant 0 : index
    %0 = memref.load %arg1[%c0] : memref<1xf32, #tpu.memory_space<smem>>
    %c0_0 = arith.constant 0 : index
    %c0_1 = arith.constant 0 : index
    %1 = vector.load %arg2[%c0_0, %c0_1] : memref<1x2048xf32, #tpu.memory_space<vmem>>, vector<1x2048xf32>
    %2 = vector.broadcast %0 : f32 to vector<1x2048xf32>
    %3 = arith.mulf %2, %1 : vector<1x2048xf32>
    %4 = math.tanh %3 : vector<1x2048xf32>
    %c0_2 = arith.constant 0 : index
    %c0_3 = arith.constant 0 : index
    %5 = vector.load %arg3[%c0_2, %c0_3] : memref<1x2048xf32, #tpu.memory_space<vmem>>, vector<1x2048xf32>
    tpu.vector_store %arg3[%c0_2, %c0_3], %4 {strides = array<i32>} : memref<1x2048xf32, #tpu.memory_space<vmem>>, vector<1x2048xf32>,
    return
  }
  func.func @transform_0(%arg0: i32) -> i32 {
    %c0_i32 = arith.constant 0 : i32
    %c0_i32_0 = arith.constant 0 : i32
    return %c0_i32 : i32
  }
  func.func @transform_1(%arg0: i32) -> (i32, i32) {
    %c0_i32 = arith.constant 0 : i32
    %c0_i32_0 = arith.constant 0 : i32
    return %arg0, %c0_i32 : i32, i32
  }
  func.func @transform_2(%arg0: i32) -> (i32, i32) {
    %c0_i32 = arith.constant 0 : i32
    %c0_i32_0 = arith.constant 0 : i32
    return %arg0, %c0_i32 : i32, i32
  }
}

</mosaic_0001>

<llo_original>
// kernel: tpu_custom_call.1
$region0: #{tpu_custom_call.1}
  #allocation0 [shape = 'u32[]', space=smem, size = 0x4, offset = 0x4, fixed_abs, tag = 'smem constant byte address 0x4 - core index']
  #allocation1 [shape = 'u32[144,128]{1,0:T(1,128)}', space=vmem, size = 0x12000, scoped, tag = 'internal scratch']
  #allocation2 [shape = 'f32[1]{0:T(128)S(6)}', space=smem, size = 0x200, scoped, tag = 'scoped memory for tpu_custom_call.1']
  %s0 = inlined_call_operand.<no memory space> [shape: f32[1], index: 0, kind: input, shape index: {}]
  %s1 = inlined_call_operand.hbm [shape: f32[1,2048], index: 1, kind: input, shape index: {}]
  %s2 = inlined_call_operand.hbm [shape: f32[1,2048], index: 2, kind: output, shape index: {}]
  %s3 = sld [smem:[#allocation0]]
  $region22: #{tpu_custom_call.1} parent=0
    _
  %s5 = ssub.s32 1, %s3
  %s6 = scalar_select 0, %s5, %s3
  %7 = sst [smem:[#allocation2]] %s0
  $region1: #{tpu_custom_call.1} parent=0
    #allocation3 [shape = 'u8[8192]{0}', space=vmem, size = 0x2000, scoped, tag = 'input window, operand 1, single buffered']
    #allocation4 [shape = 's32[1]{0}', space=sflag, size = 0x4, scoped, tag = 'scoped memory for tpu_custom_call.1']
    #allocation5 [shape = 's32[1]{0}', space=sflag, size = 0x4, scoped, tag = 'scoped memory for tpu_custom_call.1']
    #allocation6 [shape = 'u8[8192]{0}', space=vmem, size = 0x2000, scoped, tag = 'output window, operand 0, single buffered']
    %8 = vsyncpa [#allocation4], 0
    %9 = vsyncpa [#allocation5], 0
    // Predicated region
    $region2: #{tpu_custom_call.1} parent=1 // pred_check
      _
    $region3: #{tpu_custom_call.1} parent=1 // pred_check_branch
      %11 = sbr.rel (0) target = $region5
    $region4: #{tpu_custom_call.1} parent=1 // pred_region
      _
    $region5: #{tpu_custom_call.1} parent=1 // pred_fallthru
      _
    // Predicated region
    $region6: #{tpu_custom_call.1} parent=1 // pred_check
      _
    $region7: #{tpu_custom_call.1} parent=1 // pred_check_branch
      %13 = sbr.rel (0) target = $region9
    $region8: #{tpu_custom_call.1} parent=1 // pred_region
      %s15 = ssub.s32 256, 256
      %16 = vsyncadd [#allocation4], %s15
      %s18 = sshll.u32 [#allocation3], 4
      %s19 = int_to_ptr.vmem [resolvable:$true] %s18
      %21 = dma.hbm_to_vmem [thread:$0]  %s1, 256, %s19, [#allocation4]
    $region9: #{tpu_custom_call.1} parent=1 // pred_fallthru
      _
    // Predicated region
    $region10: #{tpu_custom_call.1} parent=1 // pred_check
      _
    $region11: #{tpu_custom_call.1} parent=1 // pred_check_branch
      %23 = sbr.rel (0) target = $region13
    $region12: #{tpu_custom_call.1} parent=1 // pred_region
      %24 = dma.done [#allocation4], 256
    $region13: #{tpu_custom_call.1} parent=1 // pred_fallthru
      _
    %s25 = sld [smem:[#allocation2]]
    %v26 = vld [vmem:[#allocation3] sm:$0xff]
    %v27 = vld [vmem:[#allocation3 + $0x8] sm:$0xff]
    %v28 = vstv %s25
    %v29 = vmul.f32 %v28, %v26
    %v30 = vmul.f32 %v28, %v27
    %v31 = vtanh.pop %v29
    %v32 = vtanh.pop %v30
    %33 = vst [vmem:[#allocation6] sm:$0xff] %v31
    %34 = vst [vmem:[#allocation6 + $0x8] sm:$0xff] %v32
    // Predicated region
    $region14: #{tpu_custom_call.1} parent=1 // pred_check
      _
    $region15: #{tpu_custom_call.1} parent=1 // pred_check_branch
      %36 = sbr.rel (0) target = $region17
    $region16: #{tpu_custom_call.1} parent=1 // pred_region
      %s38 = ssub.s32 256, 256
      %39 = vsyncadd [#allocation5], %s38
      %s41 = sshll.u32 [#allocation6], 4
      %s42 = int_to_ptr.vmem [resolvable:$true] %s41
      %44 = dma.vmem_to_hbm [thread:$0]  %s42, 256, %s2, [#allocation5]
    $region17: #{tpu_custom_call.1} parent=1 // pred_fallthru
      _
    // Predicated region
    $region18: #{tpu_custom_call.1} parent=1 // pred_check
      _
    $region19: #{tpu_custom_call.1} parent=1 // pred_check_branch
      %46 = sbr.rel (0) target = $region21
    $region20: #{tpu_custom_call.1} parent=1 // pred_region
      %47 = dma.done [#allocation5], 256
    $region21: #{tpu_custom_call.1} parent=1 // pred_fallthru
      _
    %48 = vsyncpa [#allocation4], 1
    %49 = vsyncpa [#allocation5], 1

</llo_original>
